<compile_context>
chip_gen: v6e
topology: v6e:2x2x1
jax: 0.10.0
libtpu: 0.0.40
codegen_flags: <defaults>
</compile_context>

<pallas_src>
import math

import numpy as np
import jax
import jax.numpy as jnp
from jax.experimental import pallas as pl
from jax.experimental.pallas import tpu as pltpu


# ---------------------------------------------------------------------------
# Kernel: per (batch, out-channel) tile, Haar inverse DWT via two matmul stages.
# ---------------------------------------------------------------------------
def idwt_haar_kernel(ll_ref, lh_ref, hl_ref, hh_ref,
                     up_ref, um_ref, vp_ref, vm_ref, o_ref):
    ll = ll_ref[0, 0]                                   # (H, W)
    lh = lh_ref[0, 0]
    hl = hl_ref[0, 0]
    hh = hh_ref[0, 0]
    up = up_ref[...]                                    # (2H, H)
    um = um_ref[...]                                    # (2H, H)
    vp = vp_ref[...]                                    # (W, 2W)
    vm = vm_ref[...]                                    # (W, 2W)

    # Column (height) synthesis: conv_transpose1d(stride=2) == banded matmul.
    lo = (jnp.dot(up, ll, preferred_element_type=jnp.float32) +
          jnp.dot(um, lh, preferred_element_type=jnp.float32))    # (2H, W)
    hi = (jnp.dot(up, hl, preferred_element_type=jnp.float32) +
          jnp.dot(um, hh, preferred_element_type=jnp.float32))    # (2H, W)
    # Row (width) synthesis.
    y = (jnp.dot(lo, vp, preferred_element_type=jnp.float32) +
         jnp.dot(hi, vm, preferred_element_type=jnp.float32))     # (2H, 2W)

    o_ref[0, 0] = y.astype(o_ref.dtype)


def haar_synthesis_matrices(H, W):
    """Matrices implementing Haar (db1) stride-2 conv_transpose along H / W."""
    r = np.float32(1.0 / math.sqrt(2.0))
    up = np.zeros((2 * H, H), np.float32)   # rec_lo along columns
    um = np.zeros((2 * H, H), np.float32)   # rec_hi along columns
    for i in range(H):
        up[2 * i, i] = r
        up[2 * i + 1, i] = r
        um[2 * i, i] = r
        um[2 * i + 1, i] = -r
    vp = np.zeros((W, 2 * W), np.float32)   # rec_lo along rows
    vm = np.zeros((W, 2 * W), np.float32)   # rec_hi along rows
    for j in range(W):
        vp[j, 2 * j] = r
        vp[j, 2 * j + 1] = r
        vm[j, 2 * j] = r
        vm[j, 2 * j + 1] = -r
    return (jnp.asarray(up), jnp.asarray(um), jnp.asarray(vp), jnp.asarray(vm))


def idwt_forward(x):
    """x: (B, 4C, H, W) float32 -> (B, C, 2H, 2W) float32 (Haar inverse DWT)."""
    # TODO(synk): only wave='db1' (Haar, mode='zero') is implemented; other
    # wavelets use mode='periodization' and longer filters (wrapped banded
    # synthesis matrices) which are not generated here.
    B, C4, H, W = x.shape
    assert C4 % 4 == 0, "channel dim must be divisible by 4 (ll, lh, hl, hh)"
    C = C4 // 4
    up, um, vp, vm = haar_synthesis_matrices(H, W)

    def subband_spec(off):
        return pl.BlockSpec((1, 1, H, W),
                            lambda b, c, off=off: (b, off + c, 0, 0))

    def const_spec(shape):
        return pl.BlockSpec(shape, lambda b, c: (0, 0))

    return pl.pallas_call(
        idwt_haar_kernel,
        out_shape=jax.ShapeDtypeStruct((B, C, 2 * H, 2 * W), x.dtype),
        grid=(B, C),
        in_specs=[
            subband_spec(0 * C),        # ll
            subband_spec(1 * C),        # lh
            subband_spec(2 * C),        # hl
            subband_spec(3 * C),        # hh
            const_spec((2 * H, H)),     # up
            const_spec((2 * H, H)),     # um
            const_spec((W, 2 * W)),     # vp
            const_spec((W, 2 * W)),     # vm
        ],
        out_specs=pl.BlockSpec((1, 1, 2 * H, 2 * W),
                               lambda b, c: (b, c, 0, 0)),
        compiler_params=pltpu.CompilerParams(
            dimension_semantics=("parallel", "parallel")),
    )(x, x, x, x, up, um, vp, vm)


# ---------------------------------------------------------------------------
# Pure-JAX reference (direct Haar formula + interleave) for validation.
# ---------------------------------------------------------------------------
def idwt_forward_ref(x):
    B, C4, H, W = x.shape
    C = C4 // 4
    ll, lh, hl, hh = jnp.split(x, 4, axis=1)
    a = (ll + lh + hl + hh) * 0.5      # y[2i,   2j  ]
    b = (ll + lh - hl - hh) * 0.5      # y[2i,   2j+1]
    c = (ll - lh + hl - hh) * 0.5      # y[2i+1, 2j  ]
    d = (ll - lh - hl + hh) * 0.5      # y[2i+1, 2j+1]
    top = jnp.stack([a, b], axis=-1).reshape(B, C, H, 2 * W)   # even rows
    bot = jnp.stack([c, d], axis=-1).reshape(B, C, H, 2 * W)   # odd rows
    return jnp.stack([top, bot], axis=-2).reshape(B, C, 2 * H, 2 * W)


if __name__ == "__main__":
    B, C4, H, W = 2, 4, 16, 16
    key = jax.random.PRNGKey(0)
    x = jax.random.normal(key, (B, C4, H, W), jnp.float32)

    y = idwt_forward(x)
    jax.block_until_ready(y)

    ref = idwt_forward_ref(x)
    assert y.shape == (B, C4 // 4, 2 * H, 2 * W)
    np.testing.assert_allclose(np.asarray(y), np.asarray(ref),
                               rtol=1e-4, atol=1e-4)
    print("KERNEL_OK")
</pallas_src>

<mosaic_0001>
module attributes {stable_mosaic.version = 11 : i64} {
  func.func @idwt_haar_kernel(%arg0: i32, %arg1: i32, %arg2: memref<1x1x16x16xf32, #tpu.memory_space<vmem>>, %arg3: memref<1x1x16x16xf32, #tpu.memory_space<vmem>>, %arg4: memref<1x1x16x16xf32, #tpu.memory_space<vmem>>, %arg5: memref<1x1x16x16xf32, #tpu.memory_space<vmem>>, %arg6: memref<32x16xf32, #tpu.memory_space<vmem>>, %arg7: memref<32x16xf32, #tpu.memory_space<vmem>>, %arg8: memref<16x32xf32, #tpu.memory_space<vmem>>, %arg9: memref<16x32xf32, #tpu.memory_space<vmem>>, %arg10: memref<1x1x32x32xf32, #tpu.memory_space<vmem>>) attributes {dimension_semantics = [#tpu.dimension_semantics<parallel>, #tpu.dimension_semantics<parallel>], iteration_bounds = array<i64: 2, 1>, scalar_prefetch = 0 : i64, scratch_operands = 0 : i64, tpu.core_type = #tpu.core_type<tc>, window_params = [{transform_indices = @transform_0, window_bounds = array<i64: 1, 1, 16, 16>}, {transform_indices = @transform_1, window_bounds = array<i64: 1, 1, 16, 16>}, {transform_indices = @transform_2, window_bounds = array<i64: 1, 1, 16, 16>}, {transform_indices = @transform_3, window_bounds = array<i64: 1, 1, 16, 16>}, {pipeline_mode = #tpu.pipeline_mode<synchronous>, transform_indices = @transform_4, window_bounds = array<i64: 32, 16>}, {pipeline_mode = #tpu.pipeline_mode<synchronous>, transform_indices = @transform_5, window_bounds = array<i64: 32, 16>}, {pipeline_mode = #tpu.pipeline_mode<synchronous>, transform_indices = @transform_6, window_bounds = array<i64: 16, 32>}, {pipeline_mode = #tpu.pipeline_mode<synchronous>, transform_indices = @transform_7, window_bounds = array<i64: 16, 32>}, {transform_indices = @transform_8, window_bounds = array<i64: 1, 1, 32, 32>}]} {
    %c0 = arith.constant 0 : index
    %c0_0 = arith.constant 0 : index
    %c0_1 = arith.constant 0 : index
    %c0_2 = arith.constant 0 : index
    %0 = vector.load %arg2[%c0, %c0_0, %c0_1, %c0_2] : memref<1x1x16x16xf32, #tpu.memory_space<vmem>>, vector<1x1x16x16xf32>
    %1 = vector.shape_cast %0 : vector<1x1x16x16xf32> to vector<16x16xf32>
    %c0_3 = arith.constant 0 : index
    %c0_4 = arith.constant 0 : index
    %c0_5 = arith.constant 0 : index
    %c0_6 = arith.constant 0 : index
    %2 = vector.load %arg3[%c0_3, %c0_4, %c0_5, %c0_6] : memref<1x1x16x16xf32, #tpu.memory_space<vmem>>, vector<1x1x16x16xf32>
    %3 = vector.shape_cast %2 : vector<1x1x16x16xf32> to vector<16x16xf32>
    %c0_7 = arith.constant 0 : index
    %c0_8 = arith.constant 0 : index
    %c0_9 = arith.constant 0 : index
    %c0_10 = arith.constant 0 : index
    %4 = vector.load %arg4[%c0_7, %c0_8, %c0_9, %c0_10] : memref<1x1x16x16xf32, #tpu.memory_space<vmem>>, vector<1x1x16x16xf32>
    %5 = vector.shape_cast %4 : vector<1x1x16x16xf32> to vector<16x16xf32>
    %c0_11 = arith.constant 0 : index
    %c0_12 = arith.constant 0 : index
    %c0_13 = arith.constant 0 : index
    %c0_14 = arith.constant 0 : index
    %6 = vector.load %arg5[%c0_11, %c0_12, %c0_13, %c0_14] : memref<1x1x16x16xf32, #tpu.memory_space<vmem>>, vector<1x1x16x16xf32>
    %7 = vector.shape_cast %6 : vector<1x1x16x16xf32> to vector<16x16xf32>
    %c0_15 = arith.constant 0 : index
    %c0_16 = arith.constant 0 : index
    %8 = vector.load %arg6[%c0_15, %c0_16] : memref<32x16xf32, #tpu.memory_space<vmem>>, vector<32x16xf32>
    %c0_17 = arith.constant 0 : index
    %c0_18 = arith.constant 0 : index
    %9 = vector.load %arg7[%c0_17, %c0_18] : memref<32x16xf32, #tpu.memory_space<vmem>>, vector<32x16xf32>
    %c0_19 = arith.constant 0 : index
    %c0_20 = arith.constant 0 : index
    %10 = vector.load %arg8[%c0_19, %c0_20] : memref<16x32xf32, #tpu.memory_space<vmem>>, vector<16x32xf32>
    %c0_21 = arith.constant 0 : index
    %c0_22 = arith.constant 0 : index
    %11 = vector.load %arg9[%c0_21, %c0_22] : memref<16x32xf32, #tpu.memory_space<vmem>>, vector<16x32xf32>
    %cst = arith.constant dense<0.000000e+00> : vector<32x16xf32>
    %12 = tpu.matmul %8, %1, %cst {dimension_numbers = #tpu.dot_dimension_numbers<[1], [0], [0], [1], [0, 0, 1, 1], [], []>} : vector<32x16xf32>, vector<16x16xf32>, vector<32x16xf32> -> vector<32x16xf32>
    %cst_23 = arith.constant dense<0.000000e+00> : vector<32x16xf32>
    %13 = tpu.matmul %9, %3, %cst_23 {dimension_numbers = #tpu.dot_dimension_numbers<[1], [0], [0], [1], [0, 0, 1, 1], [], []>} : vector<32x16xf32>, vector<16x16xf32>, vector<32x16xf32> -> vector<32x16xf32>
    %14 = arith.addf %12, %13 : vector<32x16xf32>
    %cst_24 = arith.constant dense<0.000000e+00> : vector<32x16xf32>
    %15 = tpu.matmul %8, %5, %cst_24 {dimension_numbers = #tpu.dot_dimension_numbers<[1], [0], [0], [1], [0, 0, 1, 1], [], []>} : vector<32x16xf32>, vector<16x16xf32>, vector<32x16xf32> -> vector<32x16xf32>
    %cst_25 = arith.constant dense<0.000000e+00> : vector<32x16xf32>
    %16 = tpu.matmul %9, %7, %cst_25 {dimension_numbers = #tpu.dot_dimension_numbers<[1], [0], [0], [1], [0, 0, 1, 1], [], []>} : vector<32x16xf32>, vector<16x16xf32>, vector<32x16xf32> -> vector<32x16xf32>
    %17 = arith.addf %15, %16 : vector<32x16xf32>
    %cst_26 = arith.constant dense<0.000000e+00> : vector<32x32xf32>
    %18 = tpu.matmul %14, %10, %cst_26 {dimension_numbers = #tpu.dot_dimension_numbers<[1], [0], [0], [1], [0, 0, 1, 1], [], []>} : vector<32x16xf32>, vector<16x32xf32>, vector<32x32xf32> -> vector<32x32xf32>
    %cst_27 = arith.constant dense<0.000000e+00> : vector<32x32xf32>
    %19 = tpu.matmul %17, %11, %cst_27 {dimension_numbers = #tpu.dot_dimension_numbers<[1], [0], [0], [1], [0, 0, 1, 1], [], []>} : vector<32x16xf32>, vector<16x32xf32>, vector<32x32xf32> -> vector<32x32xf32>
    %20 = arith.addf %18, %19 : vector<32x32xf32>
    %c0_28 = arith.constant 0 : index
    %c0_29 = arith.constant 0 : index
    %c0_30 = arith.constant 0 : index
    %c0_31 = arith.constant 0 : index
    %21 = vector.load %arg10[%c0_28, %c0_29, %c0_30, %c0_31] : memref<1x1x32x32xf32, #tpu.memory_space<vmem>>, vector<1x1x32x32xf32>
    %22 = vector.shape_cast %21 : vector<1x1x32x32xf32> to vector<32x32xf32>
    %23 = vector.shape_cast %20 : vector<32x32xf32> to vector<1x1x32x32xf32>
    tpu.vector_store %arg10[%c0_28, %c0_29, %c0_30, %c0_31], %23 {strides = array<i32>} : memref<1x1x32x32xf32, #tpu.memory_space<vmem>>, vector<1x1x32x32xf32>,
    return
  }
  func.func @transform_0(%arg0: i32, %arg1: i32) -> (i32, i32, i32, i32) {
    %c0_i32 = arith.constant 0 : i32
    %0 = arith.addi %c0_i32, %arg1 : i32
    %c0_i32_0 = arith.constant 0 : i32
    %c0_i32_1 = arith.constant 0 : i32
    %c0_i32_2 = arith.constant 0 : i32
    return %arg0, %0, %c0_i32_0, %c0_i32_1 : i32, i32, i32, i32
  }
  func.func @transform_1(%arg0: i32, %arg1: i32) -> (i32, i32, i32, i32) {
    %c1_i32 = arith.constant 1 : i32
    %0 = arith.addi %c1_i32, %arg1 : i32
    %c0_i32 = arith.constant 0 : i32
    %c0_i32_0 = arith.constant 0 : i32
    %c0_i32_1 = arith.constant 0 : i32
    return %arg0, %0, %c0_i32, %c0_i32_0 : i32, i32, i32, i32
  }
  func.func @transform_2(%arg0: i32, %arg1: i32) -> (i32, i32, i32, i32) {
    %c2_i32 = arith.constant 2 : i32
    %0 = arith.addi %c2_i32, %arg1 : i32
    %c0_i32 = arith.constant 0 : i32
    %c0_i32_0 = arith.constant 0 : i32
    %c0_i32_1 = arith.constant 0 : i32
    return %arg0, %0, %c0_i32, %c0_i32_0 : i32, i32, i32, i32
  }
  func.func @transform_3(%arg0: i32, %arg1: i32) -> (i32, i32, i32, i32) {
    %c3_i32 = arith.constant 3 : i32
    %0 = arith.addi %c3_i32, %arg1 : i32
    %c0_i32 = arith.constant 0 : i32
    %c0_i32_0 = arith.constant 0 : i32
    %c0_i32_1 = arith.constant 0 : i32
    return %arg0, %0, %c0_i32, %c0_i32_0 : i32, i32, i32, i32
  }
  func.func @transform_4(%arg0: i32, %arg1: i32) -> (i32, i32) {
    %c0_i32 = arith.constant 0 : i32
    %c0_i32_0 = arith.constant 0 : i32
    %c0_i32_1 = arith.constant 0 : i32
    return %c0_i32, %c0_i32_0 : i32, i32
  }
  func.func @transform_5(%arg0: i32, %arg1: i32) -> (i32, i32) {
    %c0_i32 = arith.constant 0 : i32
    %c0_i32_0 = arith.constant 0 : i32
    %c0_i32_1 = arith.constant 0 : i32
    return %c0_i32, %c0_i32_0 : i32, i32
  }
  func.func @transform_6(%arg0: i32, %arg1: i32) -> (i32, i32) {
    %c0_i32 = arith.constant 0 : i32
    %c0_i32_0 = arith.constant 0 : i32
    %c0_i32_1 = arith.constant 0 : i32
    return %c0_i32, %c0_i32_0 : i32, i32
  }
  func.func @transform_7(%arg0: i32, %arg1: i32) -> (i32, i32) {
    %c0_i32 = arith.constant 0 : i32
    %c0_i32_0 = arith.constant 0 : i32
    %c0_i32_1 = arith.constant 0 : i32
    return %c0_i32, %c0_i32_0 : i32, i32
  }
  func.func @transform_8(%arg0: i32, %arg1: i32) -> (i32, i32, i32, i32) {
    %c0_i32 = arith.constant 0 : i32
    %c0_i32_0 = arith.constant 0 : i32
    %c0_i32_1 = arith.constant 0 : i32
    return %arg0, %arg1, %c0_i32, %c0_i32_0 : i32, i32, i32, i32
  }
}

</mosaic_0001>

<llo_original>
// kernel: tpu_custom_call.1
$region0: #{tpu_custom_call.1}
  #allocation0 [shape = 'u32[]', space=smem, size = 0x4, offset = 0x4, fixed_abs, tag = 'smem constant byte address 0x4 - core index']
  #allocation1 [shape = 'u32[144,128]{1,0:T(1,128)}', space=vmem, size = 0x12000, scoped, tag = 'internal scratch']
  %s0 = inlined_call_operand.hbm [shape: f32[2,4,16,16], index: 0, kind: input, shape index: {}]
  %s1 = inlined_call_operand.hbm [shape: f32[2,4,16,16], index: 1, kind: input, shape index: {}]
  %s2 = inlined_call_operand.hbm [shape: f32[2,4,16,16], index: 2, kind: input, shape index: {}]
  %s3 = inlined_call_operand.hbm [shape: f32[2,4,16,16], index: 3, kind: input, shape index: {}]
  %s4 = inlined_call_operand.vmem [shape: f32[32,16], index: 4, kind: input, shape index: {}]
  %s5 = inlined_call_operand.vmem [shape: f32[32,16], index: 5, kind: input, shape index: {}]
  %s6 = inlined_call_operand.vmem [shape: f32[16,32], index: 6, kind: input, shape index: {}]
  %s7 = inlined_call_operand.vmem [shape: f32[16,32], index: 7, kind: input, shape index: {}]
  %s8 = inlined_call_operand.hbm [shape: f32[2,1,32,32], index: 8, kind: output, shape index: {}]
  %s9 = sld [smem:[#allocation0]]
  $region81: #{tpu_custom_call.1} parent=0
    _
  %s11 = ssub.s32 1, %s9
  %s12 = scalar_select 0, %s11, %s9
  $region1: #{tpu_custom_call.1} parent=0
    #allocation2 [shape = 'u8[16384]{0}', space=vmem, size = 0x4000, scoped, tag = 'input window, operand 0']
    #allocation3 [shape = 's32[2]{0}', space=sflag, size = 0x8, scoped, tag = 'scoped memory for tpu_custom_call.1']
    #allocation4 [shape = 's32[2]{0}', space=sflag, size = 0x8, scoped, tag = 'scoped memory for tpu_custom_call.1']
    #allocation5 [shape = 'u8[16384]{0}', space=vmem, size = 0x4000, scoped, tag = 'input window, operand 1']
    #allocation6 [shape = 's32[2]{0}', space=sflag, size = 0x8, scoped, tag = 'scoped memory for tpu_custom_call.1']
    #allocation7 [shape = 'u8[16384]{0}', space=vmem, size = 0x4000, scoped, tag = 'input window, operand 2']
    #allocation8 [shape = 'u8[16384]{0}', space=vmem, size = 0x4000, scoped, tag = 'input window, operand 3']
    #allocation9 [shape = 's32[2]{0}', space=sflag, size = 0x8, scoped, tag = 'scoped memory for tpu_custom_call.1']
    #allocation10 [shape = 'u8[32768]{0}', space=vmem, size = 0x8000, scoped, tag = 'output window, operand 0']
    %13 = vsyncpa [#allocation3], 0
    %s14 = scalar_lea.sflag [#allocation3], 1
    %15 = vsyncpa %s14, 0
    %16 = vsyncpa [#allocation6], 0
    %s17 = scalar_lea.sflag [#allocation6], 1
    %18 = vsyncpa %s17, 0
    %19 = vsyncpa [#allocation9], 0
    %s20 = scalar_lea.sflag [#allocation9], 1
    %21 = vsyncpa %s20, 0
    %22 = vsyncpa [#allocation4], 0
    %s23 = scalar_lea.sflag [#allocation4], 1
    %24 = vsyncpa %s23, 0
    loop: start=0, step=1, limit=4
    $region2: #{tpu_custom_call.1} parent=1 // loop_pre_header
      _
    $region3: #{tpu_custom_call.1} parent=1 // loop_header
      %s26 = sphi 0, %s30
      %p27 = scmp.ge.s32.totalorder %s26, 4
      %s33 = sphi 0, %s45
      %s34 = sphi 0, %s41
      %s35 = sphi 0, %s33
      %s36 = sphi 0, %s34
      %s37 = sphi 0, %s35
      %s38 = sphi 0, %s36
      %s50 = sphi 0, %s52
      %s53 = sphi 0, %s50
      %s54 = sphi 0, %s53
      %s70 = sphi 0, %s54
      %s80 = sphi 0, %s82
      %s83 = sphi 0, %s80
      %s84 = sphi 0, %s83
      %s100 = sphi 0, %s84
      %s110 = sphi 0, %s112
      %s113 = sphi 0, %s110
      %s114 = sphi 0, %s113
      %s130 = sphi 0, %s114
      %s140 = sphi 0, %s142
      %s143 = sphi 0, %s140
      %s144 = sphi 0, %s143
      %s160 = sphi 0, %s144
      %s164 = sphi 0, %s164
      %s166 = sphi 0, %s164
      %s167 = sphi 0, %s166
      %s181 = sphi 0, %s167
      %s185 = sphi 0, %s185
      %s187 = sphi 0, %s185
      %s188 = sphi 0, %s187
      %s202 = sphi 0, %s188
      %s206 = sphi 0, %s206
      %s208 = sphi 0, %s206
      %s209 = sphi 0, %s208
      %s223 = sphi 0, %s209
      %s227 = sphi 0, %s227
      %s229 = sphi 0, %s227
      %s230 = sphi 0, %s229
      %s244 = sphi 0, %s230
      %s252 = sphi 0, %s254
      %s255 = sphi 0, %s252
      %s256 = sphi 0, %s255
      %s272 = sphi 0, %s256
    $region4: #{tpu_custom_call.1} parent=1 // loop_header_branch
      %29 = sbr.rel (%p27) target = $region8
    $region5: #{tpu_custom_call.1} parent=1 // loop_body
      %s31 = ssub.s32 %s26, 1
      %s32 = ssub.s32 %s26, 2
      %s39 = sadd.s32 1, %s34
      %p40 = scmp.ge.s32.totalorder %s39, 1
      %s41 = scalar_select %p40, 0, %s39
      %s42 = sadd.s32 1, %s33
      %s43 = scalar_select %p40, %s42, %s33
      %p44 = scmp.ge.s32.totalorder %s43, 2
      %s45 = scalar_select %p44, 0, %s43
      %s46 = ssub.s32 %s33, %s45
      %s47 = ssub.s32 %s34, %s41
      %s48 = sor.u32 %s46, %s47
      %p49 = scmp.eq.s32.totalorder %s48, 0
      %s51 = sadd.s32 %s50, 1
      %s52 = scalar_select %p49, %s50, %s51
      %p55 = pneg %p49
      %p56 = scmp.eq.s32.totalorder %s26, 1
      %p57 = por %p55, %p56
      %p58 = scmp.ne.s32.totalorder %s50, %s53
      %p59 = scmp.eq.s32.totalorder %s26, 0
      %p60 = por %p58, %p59
      %p61 = scmp.ne.s32.totalorder %s50, %s53
      %p62 = scmp.eq.s32.totalorder %s31, 1
      %p63 = por %p61, %p62
      %p64 = scmp.ne.s32.totalorder %s53, %s54
      %p65 = scmp.eq.s32.totalorder %s31, 0
      %p66 = por %p64, %p65
      %p67 = scmp.ne.s32.totalorder %s53, %s54
      %p68 = scmp.eq.s32.totalorder %s32, 1
      %p69 = por %p67, %p68
      %p71 = scmp.ne.s32.totalorder %s54, %s70
      %p72 = scmp.eq.s32.totalorder %s32, 0
      %p73 = por %p71, %p72
      %s74 = sadd.s32 %s34, 1
      %s75 = sadd.s32 %s41, 1
      %s76 = ssub.s32 %s33, %s45
      %s77 = ssub.s32 %s74, %s75
      %s78 = sor.u32 %s76, %s77
      %p79 = scmp.eq.s32.totalorder %s78, 0
      %s81 = sadd.s32 %s80, 1
      %s82 = scalar_select %p79, %s80, %s81
      %p85 = pneg %p79
      %p86 = scmp.eq.s32.totalorder %s26, 1
      %p87 = por %p85, %p86
      %p88 = scmp.ne.s32.totalorder %s80, %s83
      %p89 = scmp.eq.s32.totalorder %s26, 0
      %p90 = por %p88, %p89
      %p91 = scmp.ne.s32.totalorder %s80, %s83
      %p92 = scmp.eq.s32.totalorder %s31, 1
      %p93 = por %p91, %p92
      %p94 = scmp.ne.s32.totalorder %s83, %s84
      %p95 = scmp.eq.s32.totalorder %s31, 0
      %p96 = por %p94, %p95
      %p97 = scmp.ne.s32.totalorder %s83, %s84
      %p98 = scmp.eq.s32.totalorder %s32, 1
      %p99 = por %p97, %p98
      %p101 = scmp.ne.s32.totalorder %s84, %s100
      %p102 = scmp.eq.s32.totalorder %s32, 0
      %p103 = por %p101, %p102
      %s104 = sadd.s32 %s34, 2
      %s105 = sadd.s32 %s41, 2
      %s106 = ssub.s32 %s33, %s45
      %s107 = ssub.s32 %s104, %s105
      %s108 = sor.u32 %s106, %s107
      %p109 = scmp.eq.s32.totalorder %s108, 0
      %s111 = sadd.s32 %s110, 1
      %s112 = scalar_select %p109, %s110, %s111
      %p115 = pneg %p109
      %p116 = scmp.eq.s32.totalorder %s26, 1
      %p117 = por %p115, %p116
      %p118 = scmp.ne.s32.totalorder %s110, %s113
      %p119 = scmp.eq.s32.totalorder %s26, 0
      %p120 = por %p118, %p119
      %p121 = scmp.ne.s32.totalorder %s110, %s113
      %p122 = scmp.eq.s32.totalorder %s31, 1
      %p123 = por %p121, %p122
      %p124 = scmp.ne.s32.totalorder %s113, %s114
      %p125 = scmp.eq.s32.totalorder %s31, 0
      %p126 = por %p124, %p125
      %p127 = scmp.ne.s32.totalorder %s113, %s114
      %p128 = scmp.eq.s32.totalorder %s32, 1
      %p129 = por %p127, %p128
      %p131 = scmp.ne.s32.totalorder %s114, %s130
      %p132 = scmp.eq.s32.totalorder %s32, 0
      %p133 = por %p131, %p132
      %s134 = sadd.s32 %s34, 3
      %s135 = sadd.s32 %s41, 3
      %s136 = ssub.s32 %s33, %s45
      %s137 = ssub.s32 %s134, %s135
      %s138 = sor.u32 %s136, %s137
      %p139 = scmp.eq.s32.totalorder %s138, 0
      %s141 = sadd.s32 %s140, 1
      %s142 = scalar_select %p139, %s140, %s141
      %p145 = pneg %p139
      %p146 = scmp.eq.s32.totalorder %s26, 1
      %p147 = por %p145, %p146
      %p148 = scmp.ne.s32.totalorder %s140, %s143
      %p149 = scmp.eq.s32.totalorder %s26, 0
      %p150 = por %p148, %p149
      %p151 = scmp.ne.s32.totalorder %s140, %s143
      %p152 = scmp.eq.s32.totalorder %s31, 1
      %p153 = por %p151, %p152
      %p154 = scmp.ne.s32.totalorder %s143, %s144
      %p155 = scmp.eq.s32.totalorder %s31, 0
      %p156 = por %p154, %p155
      %p157 = scmp.ne.s32.totalorder %s143, %s144
      %p158 = scmp.eq.s32.totalorder %s32, 1
      %p159 = por %p157, %p158
      %p161 = scmp.ne.s32.totalorder %s144, %s160
      %p162 = scmp.eq.s32.totalorder %s32, 0
      %p163 = por %p161, %p162
      %s165 = sadd.s32 %s164, 1
      %p168 = scmp.eq.s32.totalorder %s26, 1
      %p169 = scmp.ne.s32.totalorder %s164, %s166
      %p170 = scmp.eq.s32.totalorder %s26, 0
      %p171 = por %p169, %p170
      %p172 = scmp.ne.s32.totalorder %s164, %s166
      %p173 = scmp.eq.s32.totalorder %s31, 1
      %p174 = por %p172, %p173
      %p175 = scmp.ne.s32.totalorder %s166, %s167
      %p176 = scmp.eq.s32.totalorder %s31, 0
      %p177 = por %p175, %p176
      %p178 = scmp.ne.s32.totalorder %s166, %s167
      %p179 = scmp.eq.s32.totalorder %s32, 1
      %p180 = por %p178, %p179
      %p182 = scmp.ne.s32.totalorder %s167, %s181
      %p183 = scmp.eq.s32.totalorder %s32, 0
      %p184 = por %p182, %p183
      %s186 = sadd.s32 %s185, 1
      %p189 = scmp.eq.s32.totalorder %s26, 1
      %p190 = scmp.ne.s32.totalorder %s185, %s187
      %p191 = scmp.eq.s32.totalorder %s26, 0
      %p192 = por %p190, %p191
      %p193 = scmp.ne.s32.totalorder %s185, %s187
      %p194 = scmp.eq.s32.totalorder %s31, 1
      %p195 = por %p193, %p194
      %p196 = scmp.ne.s32.totalorder %s187, %s188
      %p197 = scmp.eq.s32.totalorder %s31, 0
      %p198 = por %p196, %p197
      %p199 = scmp.ne.s32.totalorder %s187, %s188
      %p200 = scmp.eq.s32.totalorder %s32, 1
      %p201 = por %p199, %p200
      %p203 = scmp.ne.s32.totalorder %s188, %s202
      %p204 = scmp.eq.s32.totalorder %s32, 0
      %p205 = por %p203, %p204
      %s207 = sadd.s32 %s206, 1
      %p210 = scmp.eq.s32.totalorder %s26, 1
      %p211 = scmp.ne.s32.totalorder %s206, %s208
      %p212 = scmp.eq.s32.totalorder %s26, 0
      %p213 = por %p211, %p212
      %p214 = scmp.ne.s32.totalorder %s206, %s208
      %p215 = scmp.eq.s32.totalorder %s31, 1
      %p216 = por %p214, %p215
      %p217 = scmp.ne.s32.totalorder %s208, %s209
      %p218 = scmp.eq.s32.totalorder %s31, 0
      %p219 = por %p217, %p218
      %p220 = scmp.ne.s32.totalorder %s208, %s209
      %p221 = scmp.eq.s32.totalorder %s32, 1
      %p222 = por %p220, %p221
      %p224 = scmp.ne.s32.totalorder %s209, %s223
      %p225 = scmp.eq.s32.totalorder %s32, 0
      %p226 = por %p224, %p225
      %s228 = sadd.s32 %s227, 1
      %p231 = scmp.eq.s32.totalorder %s26, 1
      %p232 = scmp.ne.s32.totalorder %s227, %s229
      %p233 = scmp.eq.s32.totalorder %s26, 0
      %p234 = por %p232, %p233
      %p235 = scmp.ne.s32.totalorder %s227, %s229
      %p236 = scmp.eq.s32.totalorder %s31, 1
      %p237 = por %p235, %p236
      %p238 = scmp.ne.s32.totalorder %s229, %s230
      %p239 = scmp.eq.s32.totalorder %s31, 0
      %p240 = por %p238, %p239
      %p241 = scmp.ne.s32.totalorder %s229, %s230
      %p242 = scmp.eq.s32.totalorder %s32, 1
      %p243 = por %p241, %p242
      %p245 = scmp.ne.s32.totalorder %s230, %s244
      %p246 = scmp.eq.s32.totalorder %s32, 0
      %p247 = por %p245, %p246
      %s248 = ssub.s32 %s33, %s45
      %s249 = ssub.s32 %s34, %s41
      %s250 = sor.u32 %s248, %s249
      %p251 = scmp.eq.s32.totalorder %s250, 0
      %s253 = sadd.s32 %s252, 1
      %s254 = scalar_select %p251, %s252, %s253
      %p257 = pneg %p251
      %p258 = scmp.eq.s32.totalorder %s26, 1
      %p259 = por %p257, %p258
      %p260 = scmp.ne.s32.totalorder %s252, %s255
      %p261 = scmp.eq.s32.totalorder %s26, 0
      %p262 = por %p260, %p261
      %p263 = scmp.ne.s32.totalorder %s252, %s255
      %p264 = scmp.eq.s32.totalorder %s31, 1
      %p265 = por %p263, %p264
      %p266 = scmp.ne.s32.totalorder %s255, %s256
      %p267 = scmp.eq.s32.totalorder %s31, 0
      %p268 = por %p266, %p267
      %p269 = scmp.ne.s32.totalorder %s255, %s256
      %p270 = scmp.eq.s32.totalorder %s32, 1
      %p271 = por %p269, %p270
      %p273 = scmp.ne.s32.totalorder %s256, %s272
      %p274 = scmp.eq.s32.totalorder %s32, 0
      %p275 = por %p273, %p274
      %p276 = scmp.le.s32.totalorder 1, %s26
      %p277 = scmp.lt.s32.totalorder %s26, 3
      %p278 = pnand %p276, %p277
      %p279 = pneg %p278
      // Predicated region
      $region9: #{tpu_custom_call.1} parent=5 // pred_check
        _
      $region10: #{tpu_custom_call.1} parent=5 // pred_check_branch
        %281 = sbr.rel (%p278) target = $region12
      $region11: #{tpu_custom_call.1} parent=5 // pred_region
        %s282 = ssub.s32 %s26, 1
        // Predicated region
        $region13: #{tpu_custom_call.1} parent=11 // pred_check
          %p283 = pneg %p177
        $region14: #{tpu_custom_call.1} parent=11 // pred_check_branch
          %285 = sbr.rel (%p283) target = $region16
        $region15: #{tpu_custom_call.1} parent=11 // pred_region
          _
        $region16: #{tpu_custom_call.1} parent=11 // pred_fallthru
          _
        // Predicated region
        $region17: #{tpu_custom_call.1} parent=11 // pred_check
          %p286 = pneg %p198
        $region18: #{tpu_custom_call.1} parent=11 // pred_check_branch
          %288 = sbr.rel (%p286) target = $region20
        $region19: #{tpu_custom_call.1} parent=11 // pred_region
          _
        $region20: #{tpu_custom_call.1} parent=11 // pred_fallthru
          _
        // Predicated region
        $region21: #{tpu_custom_call.1} parent=11 // pred_check
          %p289 = pneg %p219
        $region22: #{tpu_custom_call.1} parent=11 // pred_check_branch
          %291 = sbr.rel (%p289) target = $region24
        $region23: #{tpu_custom_call.1} parent=11 // pred_region
          _
        $region24: #{tpu_custom_call.1} parent=11 // pred_fallthru
          _
        // Predicated region
        $region25: #{tpu_custom_call.1} parent=11 // pred_check
          %p292 = pneg %p240
        $region26: #{tpu_custom_call.1} parent=11 // pred_check_branch
          %294 = sbr.rel (%p292) target = $region28
        $region27: #{tpu_custom_call.1} parent=11 // pred_region
          _
        $region28: #{tpu_custom_call.1} parent=11 // pred_fallthru
          _
      $region12: #{tpu_custom_call.1} parent=5 // pred_fallthru
        _
      %p295 = scmp.lt.s32.totalorder %s26, 2
      // Predicated region
      $region29: #{tpu_custom_call.1} parent=5 // pred_check
        %p296 = pneg %p295
      $region30: #{tpu_custom_call.1} parent=5 // pred_check_branch
        %298 = sbr.rel (%p296) target = $region32
      $region31: #{tpu_custom_call.1} parent=5 // pred_region
        // Predicated region
        $region33: #{tpu_custom_call.1} parent=31 // pred_check
          %p299 = pneg %p60
        $region34: #{tpu_custom_call.1} parent=31 // pred_check_branch
          %301 = sbr.rel (%p299) target = $region36
        $region35: #{tpu_custom_call.1} parent=31 // pred_region
          %s302 = sand.u32 %s50, 1
          %s303 = scalar_lea.sflag [#allocation3], %s302
          %s304 = sand.u32 %s50, 1
          %s305 = smul.addr %s304, 16
          %s306 = scalar_lea.vmem [#allocation2], %s305
          %s308 = ssub.s32 256, 256
          %309 = vsyncadd %s303, %s308
          %s310 = smul.addr %s34, 2
          %s311 = smul.addr %s33, 8
          %s312 = sadd.s32 %s310, %s311
          %s313 = smul.addr %s312, 128
          %s314 = scalar_lea.hbm %s0, %s313
          %s315 = sshll.u32 %s306, 4
          %s316 = int_to_ptr.vmem [resolvable:$true] %s315
          %321 = dma.hbm_to_vmem [thread:$0]  %s314, 256, %s316, %s303, 128, 128, 8
        $region36: #{tpu_custom_call.1} parent=31 // pred_fallthru
          _
        // Predicated region
        $region37: #{tpu_custom_call.1} parent=31 // pred_check
          %p322 = pneg %p90
        $region38: #{tpu_custom_call.1} parent=31 // pred_check_branch
          %324 = sbr.rel (%p322) target = $region40
        $region39: #{tpu_custom_call.1} parent=31 // pred_region
          %s325 = sand.u32 %s26, 1
          %s326 = scalar_lea.sflag [#allocation6], %s325
          %s327 = sand.u32 %s80, 1
          %s328 = smul.addr %s327, 16
          %s329 = scalar_lea.vmem [#allocation5], %s328
          %s330 = sadd.s32 %s34, 1
          %s332 = ssub.s32 256, 256
          %333 = vsyncadd %s326, %s332
          %s334 = smul.addr %s330, 2
          %s335 = smul.addr %s33, 8
          %s336 = sadd.s32 %s334, %s335
          %s337 = smul.addr %s336, 128
          %s338 = scalar_lea.hbm %s1, %s337
          %s339 = sshll.u32 %s329, 4
          %s340 = int_to_ptr.vmem [resolvable:$true] %s339
          %345 = dma.hbm_to_vmem [thread:$0]  %s338, 256, %s340, %s326, 128, 128, 8
        $region40: #{tpu_custom_call.1} parent=31 // pred_fallthru
          _
        // Predicated region
        $region41: #{tpu_custom_call.1} parent=31 // pred_check
          %p346 = pneg %p120
        $region42: #{tpu_custom_call.1} parent=31 // pred_check_branch
          %348 = sbr.rel (%p346) target = $region44
        $region43: #{tpu_custom_call.1} parent=31 // pred_region
          %s349 = sand.u32 %s26, 1
          %s350 = scalar_lea.sflag [#allocation6], %s349
          %s351 = sand.u32 %s110, 1
          %s352 = smul.addr %s351, 16
          %s353 = scalar_lea.vmem [#allocation7], %s352
          %s354 = sadd.s32 %s34, 2
          %s356 = ssub.s32 256, 256
          %357 = vsyncadd %s350, %s356
          %s358 = smul.addr %s354, 2
          %s359 = smul.addr %s33, 8
          %s360 = sadd.s32 %s358, %s359
          %s361 = smul.addr %s360, 128
          %s362 = scalar_lea.hbm %s2, %s361
          %s363 = sshll.u32 %s353, 4
          %s364 = int_to_ptr.vmem [resolvable:$true] %s363
          %369 = dma.hbm_to_vmem [thread:$0]  %s362, 256, %s364, %s350, 128, 128, 8
        $region44: #{tpu_custom_call.1} parent=31 // pred_fallthru
          _
        // Predicated region
        $region45: #{tpu_custom_call.1} parent=31 // pred_check
          %p370 = pneg %p150
        $region46: #{tpu_custom_call.1} parent=31 // pred_check_branch
          %372 = sbr.rel (%p370) target = $region48
        $region47: #{tpu_custom_call.1} parent=31 // pred_region
          %s373 = sand.u32 %s140, 1
          %s374 = scalar_lea.sflag [#allocation9], %s373
          %s375 = sand.u32 %s140, 1
          %s376 = smul.addr %s375, 16
          %s377 = scalar_lea.vmem [#allocation8], %s376
          %s378 = sadd.s32 %s34, 3
          %s380 = ssub.s32 256, 256
          %381 = vsyncadd %s374, %s380
          %s382 = smul.addr %s378, 2
          %s383 = smul.addr %s33, 8
          %s384 = sadd.s32 %s382, %s383
          %s385 = smul.addr %s384, 128
          %s386 = scalar_lea.hbm %s3, %s385
          %s387 = sshll.u32 %s377, 4
          %s388 = int_to_ptr.vmem [resolvable:$true] %s387
          %393 = dma.hbm_to_vmem [thread:$0]  %s386, 256, %s388, %s374, 128, 128, 8
        $region48: #{tpu_custom_call.1} parent=31 // pred_fallthru
          _
      $region32: #{tpu_custom_call.1} parent=5 // pred_fallthru
        _
      %p394 = scmp.le.s32.totalorder 1, %s26
      %p395 = scmp.lt.s32.totalorder %s26, 3
      %p396 = pnand %p394, %p395
      %p397 = pneg %p396
      // Predicated region
      $region49: #{tpu_custom_call.1} parent=5 // pred_check
        _
      $region50: #{tpu_custom_call.1} parent=5 // pred_check_branch
        %399 = sbr.rel (%p396) target = $region52
      $region51: #{tpu_custom_call.1} parent=5 // pred_region
        %s400 = ssub.s32 %s26, 1
        %s401 = sand.u32 %s53, 1
        %s402 = scalar_lea.sflag [#allocation3], %s401
        %s403 = sand.u32 %s53, 1
        %s404 = smul.addr %s403, 16
        %s405 = scalar_lea.vmem [#allocation2], %s404
        // Predicated region
        $region53: #{tpu_custom_call.1} parent=51 // pred_check
          %p406 = pneg %p66
        $region54: #{tpu_custom_call.1} parent=51 // pred_check_branch
          %408 = sbr.rel (%p406) target = $region56
        $region55: #{tpu_custom_call.1} parent=51 // pred_region
          %409 = dma.done %s402, 256
        $region56: #{tpu_custom_call.1} parent=51 // pred_fallthru
          _
        %s410 = sand.u32 %s31, 1
        %s411 = scalar_lea.sflag [#allocation6], %s410
        %s412 = sand.u32 %s83, 1
        %s413 = smul.addr %s412, 16
        %s414 = scalar_lea.vmem [#allocation5], %s413
        // Predicated region
        $region57: #{tpu_custom_call.1} parent=51 // pred_check
          %p415 = pneg %p96
        $region58: #{tpu_custom_call.1} parent=51 // pred_check_branch
          %417 = sbr.rel (%p415) target = $region60
        $region59: #{tpu_custom_call.1} parent=51 // pred_region
          %418 = dma.done %s411, 256
        $region60: #{tpu_custom_call.1} parent=51 // pred_fallthru
          _
        %s419 = sand.u32 %s31, 1
        %s420 = scalar_lea.sflag [#allocation6], %s419
        %s421 = sand.u32 %s113, 1
        %s422 = smul.addr %s421, 16
        %s423 = scalar_lea.vmem [#allocation7], %s422
        // Predicated region
        $region61: #{tpu_custom_call.1} parent=51 // pred_check
          %p424 = pneg %p126
        $region62: #{tpu_custom_call.1} parent=51 // pred_check_branch
          %426 = sbr.rel (%p424) target = $region64
        $region63: #{tpu_custom_call.1} parent=51 // pred_region
          %427 = dma.done %s420, 256
        $region64: #{tpu_custom_call.1} parent=51 // pred_fallthru
          _
        %s428 = sand.u32 %s143, 1
        %s429 = scalar_lea.sflag [#allocation9], %s428
        %s430 = sand.u32 %s143, 1
        %s431 = smul.addr %s430, 16
        %s432 = scalar_lea.vmem [#allocation8], %s431
        // Predicated region
        $region65: #{tpu_custom_call.1} parent=51 // pred_check
          %p433 = pneg %p156
        $region66: #{tpu_custom_call.1} parent=51 // pred_check_branch
          %435 = sbr.rel (%p433) target = $region68
        $region67: #{tpu_custom_call.1} parent=51 // pred_region
          %436 = dma.done %s429, 256
        $region68: #{tpu_custom_call.1} parent=51 // pred_fallthru
          _
        %s437 = sand.u32 %s53, 1
        %s438 = scalar_lea.sflag [#allocation3], %s437
        %s439 = sand.u32 %s53, 1
        %s440 = smul.addr %s439, 16
        %s441 = scalar_lea.vmem [#allocation2], %s440
        %p442 = pneg %p66
        %p443 = pneg %p63
        %s444 = sand.u32 %s31, 1
        %s445 = scalar_lea.sflag [#allocation6], %s444
        %s446 = sand.u32 %s83, 1
        %s447 = smul.addr %s446, 16
        %s448 = scalar_lea.vmem [#allocation5], %s447
        %p449 = pneg %p96
        %p450 = pneg %p93
        %s451 = sand.u32 %s31, 1
        %s452 = scalar_lea.sflag [#allocation6], %s451
        %s453 = sand.u32 %s113, 1
        %s454 = smul.addr %s453, 16
        %s455 = scalar_lea.vmem [#allocation7], %s454
        %p456 = pneg %p126
        %p457 = pneg %p123
        %s458 = sand.u32 %s143, 1
        %s459 = scalar_lea.sflag [#allocation9], %s458
        %s460 = sand.u32 %s143, 1
        %s461 = smul.addr %s460, 16
        %s462 = scalar_lea.vmem [#allocation8], %s461
        %p463 = pneg %p156
        %p464 = pneg %p153
        %p465 = pneg %p177
        %p466 = pneg %p174
        %p467 = pneg %p198
        %p468 = pneg %p195
        %p469 = pneg %p219
        %p470 = pneg %p216
        %p471 = pneg %p240
        %p472 = pneg %p237
        %p473 = pneg %p268
        %p474 = pneg %p265
        %s475 = sand.u32 %s255, 1
        %s476 = scalar_lea.sflag [#allocation4], %s475
        %s477 = sand.u32 %s255, 1
        %s478 = smul.addr %s477, 32
        %s479 = scalar_lea.vmem [#allocation10], %s478
        %s480 = sadd.s32 %s36, 1
        %s481 = sadd.s32 %s36, 2
        %s482 = sadd.s32 %s36, 3
        %v483 = vld [vmem:[%s405] sm:$0xff]
        %v484 = vld [vmem:[%s405 + $0x8] sm:$0xff]
        %v485 = vld [vmem:[%s414] sm:$0xff]
        %v486 = vld [vmem:[%s414 + $0x8] sm:$0xff]
        %v487 = vld [vmem:[%s423] sm:$0xff]
        %v488 = vld [vmem:[%s423 + $0x8] sm:$0xff]
        %v489 = vld [vmem:[%s432] sm:$0xff]
        %v490 = vld [vmem:[%s432 + $0x8] sm:$0xff]
        %v491 = vld [vmem:[%s4] sm:$0xff]
        %v492 = vld [vmem:[%s4 + $0x8] sm:$0xff]
        %v493 = vld [vmem:[%s4 + $0x10] sm:$0xff]
        %v494 = vld [vmem:[%s4 + $0x18] sm:$0xff]
        %v495 = vld [vmem:[%s5] sm:$0xff]
        %v496 = vld [vmem:[%s5 + $0x8] sm:$0xff]
        %v497 = vld [vmem:[%s5 + $0x10] sm:$0xff]
        %v498 = vld [vmem:[%s5 + $0x18] sm:$0xff]
        %v499 = vld [vmem:[%s6] sm:$0xff]
        %v500 = vld [vmem:[%s6 + $0x8] sm:$0xff]
        %v501 = vld [vmem:[%s7] sm:$0xff]
        %v502 = vld [vmem:[%s7 + $0x8] sm:$0xff]
        %vm503 = vcmask 130048
        %v505 = vsel %vm503, %v495, 0
        %v508 = vsel %vm503, %v496, 0
        %v511 = vsel %vm503, %v497, 0
        %v514 = vsel %vm503, %v498, 0
        %516 = vmatprep.subr.mxu0 0.0
        %517 = vmatpush1.msra.mxu0 0.0
        %518 = vmatprep.subr.mxu0 0.0
        %519 = vmatpush1.msra.mxu0 0.0
        %520 = vmatprep.subr.mxu0 0.0
        %521 = vmatpush1.msra.mxu0 0.0
        %522 = vmatprep.subr.mxu0 0.0
        %523 = vmatpush1.msra.mxu0 0.0
        %524 = vmatprep.subr.mxu0 0.0
        %525 = vmatpush1.msra.mxu0 0.0
        %526 = vmatprep.subr.mxu0 0.0
        %527 = vmatpush1.msra.mxu0 0.0
        %528 = vmatprep.subr.mxu0 0.0
        %529 = vmatpush1.msra.mxu0 0.0
        %530 = vmatprep.subr.mxu0 0.0
        %531 = vmatpush1.msra.mxu0 0.0
        %532 = vmatprep.subr.mxu0 0.0
        %533 = vmatpush1.msra.mxu0 0.0
        %534 = vmatprep.subr.mxu0 0.0
        %535 = vmatpush1.msra.mxu0 0.0
        %536 = vmatprep.subr.mxu0 0.0
        %537 = vmatpush1.msra.mxu0 0.0
        %538 = vmatprep.subr.mxu0 0.0
        %539 = vmatpush1.msra.mxu0 0.0
        %540 = vmatprep.subr.mxu0 0.0
        %541 = vmatpush1.msra.mxu0 0.0
        %542 = vmatprep.subr.mxu0 0.0
        %543 = vmatpush1.msra.mxu0 0.0
        %544 = vmatprep.subr.mxu0 0.0
        %545 = vmatpush1.msra.mxu0 %v486
        %546 = vmatprep.subr.mxu0 0.0
        %547 = vmatpush1.msra.mxu0 %v485
        %548 = vmatprep.subr.mxu0 0.0
        %549 = vmatpush2.msra.mxu0 0.0
        %550 = vmatprep.subr.mxu0 0.0
        %551 = vmatpush2.msra.mxu0 0.0
        %552 = vmatprep.subr.mxu0 0.0
        %553 = vmatpush2.msra.mxu0 0.0
        %554 = vmatprep.subr.mxu0 0.0
        %555 = vmatpush2.msra.mxu0 0.0
        %556 = vmatprep.subr.mxu0 0.0
        %557 = vmatpush2.msra.mxu0 0.0
        %558 = vmatprep.subr.mxu0 0.0
        %559 = vmatpush2.msra.mxu0 0.0
        %560 = vmatprep.subr.mxu0 0.0
        %561 = vmatpush2.msra.mxu0 0.0
        %562 = vmatprep.subr.mxu0 0.0
        %563 = vmatpush2.msra.mxu0 0.0
        %564 = vmatprep.subr.mxu0 0.0
        %565 = vmatpush2.msra.mxu0 0.0
        %566 = vmatprep.subr.mxu0 0.0
        %567 = vmatpush2.msra.mxu0 0.0
        %568 = vmatprep.subr.mxu0 0.0
        %569 = vmatpush2.msra.mxu0 0.0
        %570 = vmatprep.subr.mxu0 0.0
        %571 = vmatpush2.msra.mxu0 0.0
        %572 = vmatprep.subr.mxu0 0.0
        %573 = vmatpush2.msra.mxu0 0.0
        %574 = vmatprep.subr.mxu0 0.0
        %575 = vmatpush2.msra.mxu0 0.0
        %576 = vmatprep.subr.mxu0 0.0
        %577 = vmatpush2.msra.mxu0 0.0
        %578 = vmatprep.subr.mxu0 0.0
        %579 = vmatpush2.msra.mxu0 0.0
        %580 = vmatprep.mubr.f32.mxu0 0.0
        %581 = vmatmul.mubr.f32.gmra.mxu0 %v505
        %v582 = vpop.f32.mrf.mxu0
        %v583 = vadd.f32 0.0, %v582
        %v584 = vpop.f32.mrf.mxu0
        %585 = vmatprep.mubr.f32.mxu0 0.0
        %586 = vmatmul.mubr.f32.gmra.mxu0 %v508
        %v587 = vpop.f32.mrf.mxu0
        %v588 = vadd.f32 0.0, %v587
        %v589 = vpop.f32.mrf.mxu0
        %590 = vmatprep.mubr.f32.mxu0 0.0
        %591 = vmatmul.mubr.f32.gmra.mxu0 %v511
        %v592 = vpop.f32.mrf.mxu0
        %v593 = vadd.f32 0.0, %v592
        %v594 = vpop.f32.mrf.mxu0
        %595 = vmatprep.mubr.f32.mxu0 0.0
        %596 = vmatmul.mubr.f32.gmra.mxu0 %v514
        %v597 = vpop.f32.mrf.mxu0
        %v598 = vadd.f32 0.0, %v597
        %v599 = vpop.f32.mrf.mxu0
        %600 = vdwg.mxu0
        %v602 = vsel %vm503, %v491, 0
        %v605 = vsel %vm503, %v492, 0
        %v608 = vsel %vm503, %v493, 0
        %v611 = vsel %vm503, %v494, 0
        %613 = vmatprep.subr.mxu0 0.0
        %614 = vmatpush1.msra.mxu0 0.0
        %615 = vmatprep.subr.mxu0 0.0
        %616 = vmatpush1.msra.mxu0 0.0
        %617 = vmatprep.subr.mxu0 0.0
        %618 = vmatpush1.msra.mxu0 0.0
        %619 = vmatprep.subr.mxu0 0.0
        %620 = vmatpush1.msra.mxu0 0.0
        %621 = vmatprep.subr.mxu0 0.0
        %622 = vmatpush1.msra.mxu0 0.0
        %623 = vmatprep.subr.mxu0 0.0
        %624 = vmatpush1.msra.mxu0 0.0
        %625 = vmatprep.subr.mxu0 0.0
        %626 = vmatpush1.msra.mxu0 0.0
        %627 = vmatprep.subr.mxu0 0.0
        %628 = vmatpush1.msra.mxu0 0.0
        %629 = vmatprep.subr.mxu0 0.0
        %630 = vmatpush1.msra.mxu0 0.0
        %631 = vmatprep.subr.mxu0 0.0
        %632 = vmatpush1.msra.mxu0 0.0
        %633 = vmatprep.subr.mxu0 0.0
        %634 = vmatpush1.msra.mxu0 0.0
        %635 = vmatprep.subr.mxu0 0.0
        %636 = vmatpush1.msra.mxu0 0.0
        %637 = vmatprep.subr.mxu0 0.0
        %638 = vmatpush1.msra.mxu0 0.0
        %639 = vmatprep.subr.mxu0 0.0
        %640 = vmatpush1.msra.mxu0 0.0
        %641 = vmatprep.subr.mxu0 0.0
        %642 = vmatpush1.msra.mxu0 %v484
        %643 = vmatprep.subr.mxu0 0.0
        %644 = vmatpush1.msra.mxu0 %v483
        %645 = vmatprep.subr.mxu0 0.0
        %646 = vmatpush2.msra.mxu0 0.0
        %647 = vmatprep.subr.mxu0 0.0
        %648 = vmatpush2.msra.mxu0 0.0
        %649 = vmatprep.subr.mxu0 0.0
        %650 = vmatpush2.msra.mxu0 0.0
        %651 = vmatprep.subr.mxu0 0.0
        %652 = vmatpush2.msra.mxu0 0.0
        %653 = vmatprep.subr.mxu0 0.0
        %654 = vmatpush2.msra.mxu0 0.0
        %655 = vmatprep.subr.mxu0 0.0
        %656 = vmatpush2.msra.mxu0 0.0
        %657 = vmatprep.subr.mxu0 0.0
        %658 = vmatpush2.msra.mxu0 0.0
        %659 = vmatprep.subr.mxu0 0.0
        %660 = vmatpush2.msra.mxu0 0.0
        %661 = vmatprep.subr.mxu0 0.0
        %662 = vmatpush2.msra.mxu0 0.0
        %663 = vmatprep.subr.mxu0 0.0
        %664 = vmatpush2.msra.mxu0 0.0
        %665 = vmatprep.subr.mxu0 0.0
        %666 = vmatpush2.msra.mxu0 0.0
        %667 = vmatprep.subr.mxu0 0.0
        %668 = vmatpush2.msra.mxu0 0.0
        %669 = vmatprep.subr.mxu0 0.0
        %670 = vmatpush2.msra.mxu0 0.0
        %671 = vmatprep.subr.mxu0 0.0
        %672 = vmatpush2.msra.mxu0 0.0
        %673 = vmatprep.subr.mxu0 0.0
        %674 = vmatpush2.msra.mxu0 0.0
        %675 = vmatprep.subr.mxu0 0.0
        %676 = vmatpush2.msra.mxu0 0.0
        %677 = vmatprep.mubr.f32.mxu0 0.0
        %678 = vmatmul.mubr.f32.gmra.mxu0 %v602
        %v679 = vpop.f32.mrf.mxu0
        %v680 = vadd.f32 %v583, %v679
        %v681 = vpop.f32.mrf.mxu0
        %682 = vmatprep.mubr.f32.mxu0 0.0
        %683 = vmatmul.mubr.f32.gmra.mxu0 %v605
        %v684 = vpop.f32.mrf.mxu0
        %v685 = vadd.f32 %v588, %v684
        %v686 = vpop.f32.mrf.mxu0
        %687 = vmatprep.mubr.f32.mxu0 0.0
        %688 = vmatmul.mubr.f32.gmra.mxu0 %v608
        %v689 = vpop.f32.mrf.mxu0
        %v690 = vadd.f32 %v593, %v689
        %v691 = vpop.f32.mrf.mxu0
        %692 = vmatprep.mubr.f32.mxu0 0.0
        %693 = vmatmul.mubr.f32.gmra.mxu0 %v611
        %v694 = vpop.f32.mrf.mxu0
        %v695 = vadd.f32 %v598, %v694
        %v696 = vpop.f32.mrf.mxu0
        %697 = vdwg.mxu0
        %698 = vmatprep.subr.mxu0 0.0
        %699 = vmatpush1.msra.mxu0 0.0
        %700 = vmatprep.subr.mxu0 0.0
        %701 = vmatpush1.msra.mxu0 0.0
        %702 = vmatprep.subr.mxu0 0.0
        %703 = vmatpush1.msra.mxu0 0.0
        %704 = vmatprep.subr.mxu0 0.0
        %705 = vmatpush1.msra.mxu0 0.0
        %706 = vmatprep.subr.mxu0 0.0
        %707 = vmatpush1.msra.mxu0 0.0
        %708 = vmatprep.subr.mxu0 0.0
        %709 = vmatpush1.msra.mxu0 0.0
        %710 = vmatprep.subr.mxu0 0.0
        %711 = vmatpush1.msra.mxu0 0.0
        %712 = vmatprep.subr.mxu0 0.0
        %713 = vmatpush1.msra.mxu0 0.0
        %714 = vmatprep.subr.mxu0 0.0
        %715 = vmatpush1.msra.mxu0 0.0
        %716 = vmatprep.subr.mxu0 0.0
        %717 = vmatpush1.msra.mxu0 0.0
        %718 = vmatprep.subr.mxu0 0.0
        %719 = vmatpush1.msra.mxu0 0.0
        %720 = vmatprep.subr.mxu0 0.0
        %721 = vmatpush1.msra.mxu0 0.0
        %722 = vmatprep.subr.mxu0 0.0
        %723 = vmatpush1.msra.mxu0 0.0
        %724 = vmatprep.subr.mxu0 0.0
        %725 = vmatpush1.msra.mxu0 0.0
        %726 = vmatprep.subr.mxu0 0.0
        %727 = vmatpush1.msra.mxu0 %v490
        %728 = vmatprep.subr.mxu0 0.0
        %729 = vmatpush1.msra.mxu0 %v489
        %730 = vmatprep.subr.mxu0 0.0
        %731 = vmatpush2.msra.mxu0 0.0
        %732 = vmatprep.subr.mxu0 0.0
        %733 = vmatpush2.msra.mxu0 0.0
        %734 = vmatprep.subr.mxu0 0.0
        %735 = vmatpush2.msra.mxu0 0.0
        %736 = vmatprep.subr.mxu0 0.0
        %737 = vmatpush2.msra.mxu0 0.0
        %738 = vmatprep.subr.mxu0 0.0
        %739 = vmatpush2.msra.mxu0 0.0
        %740 = vmatprep.subr.mxu0 0.0
        %741 = vmatpush2.msra.mxu0 0.0
        %742 = vmatprep.subr.mxu0 0.0
        %743 = vmatpush2.msra.mxu0 0.0
        %744 = vmatprep.subr.mxu0 0.0
        %745 = vmatpush2.msra.mxu0 0.0
        %746 = vmatprep.subr.mxu0 0.0
        %747 = vmatpush2.msra.mxu0 0.0
        %748 = vmatprep.subr.mxu0 0.0
        %749 = vmatpush2.msra.mxu0 0.0
        %750 = vmatprep.subr.mxu0 0.0
        %751 = vmatpush2.msra.mxu0 0.0
        %752 = vmatprep.subr.mxu0 0.0
        %753 = vmatpush2.msra.mxu0 0.0
        %754 = vmatprep.subr.mxu0 0.0
        %755 = vmatpush2.msra.mxu0 0.0
        %756 = vmatprep.subr.mxu0 0.0
        %757 = vmatpush2.msra.mxu0 0.0
        %758 = vmatprep.subr.mxu0 0.0
        %759 = vmatpush2.msra.mxu0 0.0
        %760 = vmatprep.subr.mxu0 0.0
        %761 = vmatpush2.msra.mxu0 0.0
        %762 = vmatprep.mubr.f32.mxu0 0.0
        %763 = vmatmul.mubr.f32.gmra.mxu0 %v505
        %v764 = vpop.f32.mrf.mxu0
        %v765 = vadd.f32 0.0, %v764
        %v766 = vpop.f32.mrf.mxu0
        %767 = vmatprep.mubr.f32.mxu0 0.0
        %768 = vmatmul.mubr.f32.gmra.mxu0 %v508
        %v769 = vpop.f32.mrf.mxu0
        %v770 = vadd.f32 0.0, %v769
        %v771 = vpop.f32.mrf.mxu0
        %772 = vmatprep.mubr.f32.mxu0 0.0
        %773 = vmatmul.mubr.f32.gmra.mxu0 %v511
        %v774 = vpop.f32.mrf.mxu0
        %v775 = vadd.f32 0.0, %v774
        %v776 = vpop.f32.mrf.mxu0
        %777 = vmatprep.mubr.f32.mxu0 0.0
        %778 = vmatmul.mubr.f32.gmra.mxu0 %v514
        %v779 = vpop.f32.mrf.mxu0
        %v780 = vadd.f32 0.0, %v779
        %v781 = vpop.f32.mrf.mxu0
        %782 = vdwg.mxu0
        %783 = vmatprep.subr.mxu0 0.0
        %784 = vmatpush1.msra.mxu0 0.0
        %785 = vmatprep.subr.mxu0 0.0
        %786 = vmatpush1.msra.mxu0 0.0
        %787 = vmatprep.subr.mxu0 0.0
        %788 = vmatpush1.msra.mxu0 0.0
        %789 = vmatprep.subr.mxu0 0.0
        %790 = vmatpush1.msra.mxu0 0.0
        %791 = vmatprep.subr.mxu0 0.0
        %792 = vmatpush1.msra.mxu0 0.0
        %793 = vmatprep.subr.mxu0 0.0
        %794 = vmatpush1.msra.mxu0 0.0
        %795 = vmatprep.subr.mxu0 0.0
        %796 = vmatpush1.msra.mxu0 0.0
        %797 = vmatprep.subr.mxu0 0.0
        %798 = vmatpush1.msra.mxu0 0.0
        %799 = vmatprep.subr.mxu0 0.0
        %800 = vmatpush1.msra.mxu0 0.0
        %801 = vmatprep.subr.mxu0 0.0
        %802 = vmatpush1.msra.mxu0 0.0
        %803 = vmatprep.subr.mxu0 0.0
        %804 = vmatpush1.msra.mxu0 0.0
        %805 = vmatprep.subr.mxu0 0.0
        %806 = vmatpush1.msra.mxu0 0.0
        %807 = vmatprep.subr.mxu0 0.0
        %808 = vmatpush1.msra.mxu0 0.0
        %809 = vmatprep.subr.mxu0 0.0
        %810 = vmatpush1.msra.mxu0 0.0
        %811 = vmatprep.subr.mxu0 0.0
        %812 = vmatpush1.msra.mxu0 %v488
        %813 = vmatprep.subr.mxu0 0.0
        %814 = vmatpush1.msra.mxu0 %v487
        %815 = vmatprep.subr.mxu0 0.0
        %816 = vmatpush2.msra.mxu0 0.0
        %817 = vmatprep.subr.mxu0 0.0
        %818 = vmatpush2.msra.mxu0 0.0
        %819 = vmatprep.subr.mxu0 0.0
        %820 = vmatpush2.msra.mxu0 0.0
        %821 = vmatprep.subr.mxu0 0.0
        %822 = vmatpush2.msra.mxu0 0.0
        %823 = vmatprep.subr.mxu0 0.0
        %824 = vmatpush2.msra.mxu0 0.0
        %825 = vmatprep.subr.mxu0 0.0
        %826 = vmatpush2.msra.mxu0 0.0
        %827 = vmatprep.subr.mxu0 0.0
        %828 = vmatpush2.msra.mxu0 0.0
        %829 = vmatprep.subr.mxu0 0.0
        %830 = vmatpush2.msra.mxu0 0.0
        %831 = vmatprep.subr.mxu0 0.0
        %832 = vmatpush2.msra.mxu0 0.0
        %833 = vmatprep.subr.mxu0 0.0
        %834 = vmatpush2.msra.mxu0 0.0
        %835 = vmatprep.subr.mxu0 0.0
        %836 = vmatpush2.msra.mxu0 0.0
        %837 = vmatprep.subr.mxu0 0.0
        %838 = vmatpush2.msra.mxu0 0.0
        %839 = vmatprep.subr.mxu0 0.0
        %840 = vmatpush2.msra.mxu0 0.0
        %841 = vmatprep.subr.mxu0 0.0
        %842 = vmatpush2.msra.mxu0 0.0
        %843 = vmatprep.subr.mxu0 0.0
        %844 = vmatpush2.msra.mxu0 0.0
        %845 = vmatprep.subr.mxu0 0.0
        %846 = vmatpush2.msra.mxu0 0.0
        %847 = vmatprep.mubr.f32.mxu0 0.0
        %848 = vmatmul.mubr.f32.gmra.mxu0 %v602
        %v849 = vpop.f32.mrf.mxu0
        %v850 = vadd.f32 %v765, %v849
        %v851 = vpop.f32.mrf.mxu0
        %852 = vmatprep.mubr.f32.mxu0 0.0
        %853 = vmatmul.mubr.f32.gmra.mxu0 %v605
        %v854 = vpop.f32.mrf.mxu0
        %v855 = vadd.f32 %v770, %v854
        %v856 = vpop.f32.mrf.mxu0
        %857 = vmatprep.mubr.f32.mxu0 0.0
        %858 = vmatmul.mubr.f32.gmra.mxu0 %v608
        %v859 = vpop.f32.mrf.mxu0
        %v860 = vadd.f32 %v775, %v859
        %v861 = vpop.f32.mrf.mxu0
        %862 = vmatprep.mubr.f32.mxu0 0.0
        %863 = vmatmul.mubr.f32.gmra.mxu0 %v611
        %v864 = vpop.f32.mrf.mxu0
        %v865 = vadd.f32 %v780, %v864
        %v866 = vpop.f32.mrf.mxu0
        %867 = vdwg.mxu0
        %v869 = vsel %vm503, %v850, 0
        %v872 = vsel %vm503, %v855, 0
        %v875 = vsel %vm503, %v860, 0
        %v878 = vsel %vm503, %v865, 0
        %880 = vmatprep.subr.mxu0 0.0
        %881 = vmatpush1.msra.mxu0 0.0
        %882 = vmatprep.subr.mxu0 0.0
        %883 = vmatpush1.msra.mxu0 0.0
        %884 = vmatprep.subr.mxu0 0.0
        %885 = vmatpush1.msra.mxu0 0.0
        %886 = vmatprep.subr.mxu0 0.0
        %887 = vmatpush1.msra.mxu0 0.0
        %888 = vmatprep.subr.mxu0 0.0
        %889 = vmatpush1.msra.mxu0 0.0
        %890 = vmatprep.subr.mxu0 0.0
        %891 = vmatpush1.msra.mxu0 0.0
        %892 = vmatprep.subr.mxu0 0.0
        %893 = vmatpush1.msra.mxu0 0.0
        %894 = vmatprep.subr.mxu0 0.0
        %895 = vmatpush1.msra.mxu0 0.0
        %896 = vmatprep.subr.mxu0 0.0
        %897 = vmatpush1.msra.mxu0 0.0
        %898 = vmatprep.subr.mxu0 0.0
        %899 = vmatpush1.msra.mxu0 0.0
        %900 = vmatprep.subr.mxu0 0.0
        %901 = vmatpush1.msra.mxu0 0.0
        %902 = vmatprep.subr.mxu0 0.0
        %903 = vmatpush1.msra.mxu0 0.0
        %904 = vmatprep.subr.mxu0 0.0
        %905 = vmatpush1.msra.mxu0 0.0
        %906 = vmatprep.subr.mxu0 0.0
        %907 = vmatpush1.msra.mxu0 0.0
        %908 = vmatprep.subr.mxu0 0.0
        %909 = vmatpush1.msra.mxu0 %v502
        %910 = vmatprep.subr.mxu0 0.0
        %911 = vmatpush1.msra.mxu0 %v501
        %912 = vmatprep.subr.mxu0 0.0
        %913 = vmatpush2.msra.mxu0 0.0
        %914 = vmatprep.subr.mxu0 0.0
        %915 = vmatpush2.msra.mxu0 0.0
        %916 = vmatprep.subr.mxu0 0.0
        %917 = vmatpush2.msra.mxu0 0.0
        %918 = vmatprep.subr.mxu0 0.0
        %919 = vmatpush2.msra.mxu0 0.0
        %920 = vmatprep.subr.mxu0 0.0
        %921 = vmatpush2.msra.mxu0 0.0
        %922 = vmatprep.subr.mxu0 0.0
        %923 = vmatpush2.msra.mxu0 0.0
        %924 = vmatprep.subr.mxu0 0.0
        %925 = vmatpush2.msra.mxu0 0.0
        %926 = vmatprep.subr.mxu0 0.0
        %927 = vmatpush2.msra.mxu0 0.0
        %928 = vmatprep.subr.mxu0 0.0
        %929 = vmatpush2.msra.mxu0 0.0
        %930 = vmatprep.subr.mxu0 0.0
        %931 = vmatpush2.msra.mxu0 0.0
        %932 = vmatprep.subr.mxu0 0.0
        %933 = vmatpush2.msra.mxu0 0.0
        %934 = vmatprep.subr.mxu0 0.0
        %935 = vmatpush2.msra.mxu0 0.0
        %936 = vmatprep.subr.mxu0 0.0
        %937 = vmatpush2.msra.mxu0 0.0
        %938 = vmatprep.subr.mxu0 0.0
        %939 = vmatpush2.msra.mxu0 0.0
        %940 = vmatprep.subr.mxu0 0.0
        %941 = vmatpush2.msra.mxu0 0.0
        %942 = vmatprep.subr.mxu0 0.0
        %943 = vmatpush2.msra.mxu0 0.0
        %944 = vmatprep.mubr.f32.mxu0 0.0
        %945 = vmatmul.mubr.f32.gmra.mxu0 %v869
        %v946 = vpop.f32.mrf.mxu0
        %v947 = vadd.f32 0.0, %v946
        %v948 = vpop.f32.mrf.mxu0
        %949 = vmatprep.mubr.f32.mxu0 0.0
        %950 = vmatmul.mubr.f32.gmra.mxu0 %v872
        %v951 = vpop.f32.mrf.mxu0
        %v952 = vadd.f32 0.0, %v951
        %v953 = vpop.f32.mrf.mxu0
        %954 = vmatprep.mubr.f32.mxu0 0.0
        %955 = vmatmul.mubr.f32.gmra.mxu0 %v875
        %v956 = vpop.f32.mrf.mxu0
        %v957 = vadd.f32 0.0, %v956
        %v958 = vpop.f32.mrf.mxu0
        %959 = vmatprep.mubr.f32.mxu0 0.0
        %960 = vmatmul.mubr.f32.gmra.mxu0 %v878
        %v961 = vpop.f32.mrf.mxu0
        %v962 = vadd.f32 0.0, %v961
        %v963 = vpop.f32.mrf.mxu0
        %964 = vdwg.mxu0
        %v966 = vsel %vm503, %v680, 0
        %v969 = vsel %vm503, %v685, 0
        %v972 = vsel %vm503, %v690, 0
        %v975 = vsel %vm503, %v695, 0
        %977 = vmatprep.subr.mxu0 0.0
        %978 = vmatpush1.msra.mxu0 0.0
        %979 = vmatprep.subr.mxu0 0.0
        %980 = vmatpush1.msra.mxu0 0.0
        %981 = vmatprep.subr.mxu0 0.0
        %982 = vmatpush1.msra.mxu0 0.0
        %983 = vmatprep.subr.mxu0 0.0
        %984 = vmatpush1.msra.mxu0 0.0
        %985 = vmatprep.subr.mxu0 0.0
        %986 = vmatpush1.msra.mxu0 0.0
        %987 = vmatprep.subr.mxu0 0.0
        %988 = vmatpush1.msra.mxu0 0.0
        %989 = vmatprep.subr.mxu0 0.0
        %990 = vmatpush1.msra.mxu0 0.0
        %991 = vmatprep.subr.mxu0 0.0
        %992 = vmatpush1.msra.mxu0 0.0
        %993 = vmatprep.subr.mxu0 0.0
        %994 = vmatpush1.msra.mxu0 0.0
        %995 = vmatprep.subr.mxu0 0.0
        %996 = vmatpush1.msra.mxu0 0.0
        %997 = vmatprep.subr.mxu0 0.0
        %998 = vmatpush1.msra.mxu0 0.0
        %999 = vmatprep.subr.mxu0 0.0
        %1000 = vmatpush1.msra.mxu0 0.0
        %1001 = vmatprep.subr.mxu0 0.0
        %1002 = vmatpush1.msra.mxu0 0.0
        %1003 = vmatprep.subr.mxu0 0.0
        %1004 = vmatpush1.msra.mxu0 0.0
        %1005 = vmatprep.subr.mxu0 0.0
        %1006 = vmatpush1.msra.mxu0 %v500
        %1007 = vmatprep.subr.mxu0 0.0
        %1008 = vmatpush1.msra.mxu0 %v499
        %1009 = vmatprep.subr.mxu0 0.0
        %1010 = vmatpush2.msra.mxu0 0.0
        %1011 = vmatprep.subr.mxu0 0.0
        %1012 = vmatpush2.msra.mxu0 0.0
        %1013 = vmatprep.subr.mxu0 0.0
        %1014 = vmatpush2.msra.mxu0 0.0
        %1015 = vmatprep.subr.mxu0 0.0
        %1016 = vmatpush2.msra.mxu0 0.0
        %1017 = vmatprep.subr.mxu0 0.0
        %1018 = vmatpush2.msra.mxu0 0.0
        %1019 = vmatprep.subr.mxu0 0.0
        %1020 = vmatpush2.msra.mxu0 0.0
        %1021 = vmatprep.subr.mxu0 0.0
        %1022 = vmatpush2.msra.mxu0 0.0
        %1023 = vmatprep.subr.mxu0 0.0
        %1024 = vmatpush2.msra.mxu0 0.0
        %1025 = vmatprep.subr.mxu0 0.0
        %1026 = vmatpush2.msra.mxu0 0.0
        %1027 = vmatprep.subr.mxu0 0.0
        %1028 = vmatpush2.msra.mxu0 0.0
        %1029 = vmatprep.subr.mxu0 0.0
        %1030 = vmatpush2.msra.mxu0 0.0
        %1031 = vmatprep.subr.mxu0 0.0
        %1032 = vmatpush2.msra.mxu0 0.0
        %1033 = vmatprep.subr.mxu0 0.0
        %1034 = vmatpush2.msra.mxu0 0.0
        %1035 = vmatprep.subr.mxu0 0.0
        %1036 = vmatpush2.msra.mxu0 0.0
        %1037 = vmatprep.subr.mxu0 0.0
        %1038 = vmatpush2.msra.mxu0 0.0
        %1039 = vmatprep.subr.mxu0 0.0
        %1040 = vmatpush2.msra.mxu0 0.0
        %1041 = vmatprep.mubr.f32.mxu0 0.0
        %1042 = vmatmul.mubr.f32.gmra.mxu0 %v966
        %v1043 = vpop.f32.mrf.mxu0
        %v1044 = vadd.f32 %v947, %v1043
        %v1045 = vpop.f32.mrf.mxu0
        %1046 = vmatprep.mubr.f32.mxu0 0.0
        %1047 = vmatmul.mubr.f32.gmra.mxu0 %v969
        %v1048 = vpop.f32.mrf.mxu0
        %v1049 = vadd.f32 %v952, %v1048
        %v1050 = vpop.f32.mrf.mxu0
        %1051 = vmatprep.mubr.f32.mxu0 0.0
        %1052 = vmatmul.mubr.f32.gmra.mxu0 %v972
        %v1053 = vpop.f32.mrf.mxu0
        %v1054 = vadd.f32 %v957, %v1053
        %v1055 = vpop.f32.mrf.mxu0
        %1056 = vmatprep.mubr.f32.mxu0 0.0
        %1057 = vmatmul.mubr.f32.gmra.mxu0 %v975
        %v1058 = vpop.f32.mrf.mxu0
        %v1059 = vadd.f32 %v962, %v1058
        %v1060 = vpop.f32.mrf.mxu0
        %1061 = vdwg.mxu0
        %vm1062 = vcmask 261120
        %1063 = vst.msk [vmem:[%s479] sm:$0xff] %vm1062, %v1044
        %1064 = vst.msk [vmem:[%s479 + $0x8] sm:$0xff] %vm1062, %v1049
        %1065 = vst.msk [vmem:[%s479 + $0x10] sm:$0xff] %vm1062, %v1054
        %1066 = vst.msk [vmem:[%s479 + $0x18] sm:$0xff] %vm1062, %v1059
        %s1067 = sand.u32 %s255, 1
        %s1068 = scalar_lea.sflag [#allocation4], %s1067
        %s1069 = sand.u32 %s255, 1
        %s1070 = smul.addr %s1069, 32
        %s1071 = scalar_lea.vmem [#allocation10], %s1070
        // Predicated region
        $region69: #{tpu_custom_call.1} parent=51 // pred_check
          %p1072 = pneg %p265
        $region70: #{tpu_custom_call.1} parent=51 // pred_check_branch
          %1074 = sbr.rel (%p1072) target = $region72
        $region71: #{tpu_custom_call.1} parent=51 // pred_region
          %s1076 = ssub.s32 512, 512
          %1077 = vsyncadd %s1068, %s1076
          %s1078 = smul.addr %s36, 4
          %s1079 = smul.addr %s35, 4
          %s1080 = sadd.s32 %s1078, %s1079
          %s1081 = smul.addr %s1080, 128
          %s1082 = scalar_lea.hbm %s8, %s1081
          %s1083 = sshll.u32 %s1071, 4
          %s1084 = int_to_ptr.vmem [resolvable:$true] %s1083
          %1089 = dma.vmem_to_hbm [thread:$0]  %s1084, 512, %s1082, %s1068, 128, 128, 8
        $region72: #{tpu_custom_call.1} parent=51 // pred_fallthru
          _
      $region52: #{tpu_custom_call.1} parent=5 // pred_fallthru
        _
      %p1090 = scmp.le.s32.totalorder 2, %s26
      // Predicated region
      $region73: #{tpu_custom_call.1} parent=5 // pred_check
        %p1091 = pneg %p1090
      $region74: #{tpu_custom_call.1} parent=5 // pred_check_branch
        %1093 = sbr.rel (%p1091) target = $region76
      $region75: #{tpu_custom_call.1} parent=5 // pred_region
        %s1094 = ssub.s32 %s26, 2
        // Predicated region
        $region77: #{tpu_custom_call.1} parent=75 // pred_check
          %p1095 = pneg %p271
        $region78: #{tpu_custom_call.1} parent=75 // pred_check_branch
          %1097 = sbr.rel (%p1095) target = $region80
        $region79: #{tpu_custom_call.1} parent=75 // pred_region
          %s1098 = sand.u32 %s256, 1
          %s1099 = scalar_lea.sflag [#allocation4], %s1098
          %s1100 = sand.u32 %s256, 1
          %s1101 = smul.addr %s1100, 32
          %s1102 = scalar_lea.vmem [#allocation10], %s1101
          %1103 = dma.done %s1099, 512
        $region80: #{tpu_custom_call.1} parent=75 // pred_fallthru
          _
      $region76: #{tpu_custom_call.1} parent=5 // pred_fallthru
        _
    $region6: #{tpu_custom_call.1} parent=1 // loop_footer
      %s30 = sadd.s32 1, %s26
    $region7: #{tpu_custom_call.1} parent=1 // loop_footer_branch
      %25 = sbr.rel target = $region3
    $region8: #{tpu_custom_call.1} parent=1 // loop_exit
      _
    %1104 = vsyncpa [#allocation3], 1
    %s1105 = scalar_lea.sflag [#allocation3], 1
    %1106 = vsyncpa %s1105, 1
    %1107 = vsyncpa [#allocation6], 1
    %s1108 = scalar_lea.sflag [#allocation6], 1
    %1109 = vsyncpa %s1108, 1
    %1110 = vsyncpa [#allocation9], 1
    %s1111 = scalar_lea.sflag [#allocation9], 1
    %1112 = vsyncpa %s1111, 1
    %1113 = vsyncpa [#allocation4], 1
    %s1114 = scalar_lea.sflag [#allocation4], 1
    %1115 = vsyncpa %s1114, 1

</llo_original>
